<compile_context>
chip_gen: v7x
topology: tpu7x:2x2x1
jax: 0.10.0
libtpu: 0.0.40
codegen_flags: <defaults>
</compile_context>

<pallas_src>
import math

import jax
import jax.numpy as jnp
from jax import lax
from jax.experimental import pallas as pl
from jax.experimental.pallas import tpu as pltpu

LN_EPS = 1e-5
_GELU_C = math.sqrt(2.0 / math.pi)


def _fillnan(x, nan_value=0.0):
    """torch.nan_to_num(x, nan=0, posinf=0, neginf=0): zero every non-finite entry."""
    return jnp.where(jnp.isfinite(x), x, jnp.asarray(nan_value, x.dtype))


def _layer_norm(x, gamma, beta, eps=LN_EPS):
    mu = jnp.mean(x, axis=-1, keepdims=True)
    xc = x - mu
    var = jnp.mean(xc * xc, axis=-1, keepdims=True)
    return xc * lax.rsqrt(var + eps) * gamma + beta


def _new_gelu(x):
    return 0.5 * x * (1.0 + jnp.tanh(_GELU_C * (x + 0.044715 * x * x * x)))


def _const_spec(shape, buffer_count):
    """BlockSpec for a grid-invariant operand (weights / biases / LN params).

    Single-buffers the block when requested: its index never changes, so a second
    pipeline buffer is pure VMEM waste (matters most on v7x's 64 MiB VMEM).
    """
    index_map = lambda *_: (0,) * len(shape)
    if buffer_count is not None and hasattr(pl, "Buffered"):
        try:
            return pl.BlockSpec(shape, index_map,
                                pipeline_mode=pl.Buffered(buffer_count))
        except TypeError:  # older BlockSpec without pipeline_mode
            pass
    return pl.BlockSpec(shape, index_map)


# --------------------------- kernel 1: ln_1 + c_attn ---------------------------
def _make_qkv_kernel(C, scale):
    def kernel(x_ref, g1_ref, b1_ref, wA_ref, bA_ref, q_ref, k_ref, v_ref):
        x = x_ref[0]                                             # (rows, C) f32
        h = _layer_norm(x, g1_ref[...], b1_ref[...])             # ln_1 in f32
        qkv = jnp.dot(h.astype(wA_ref.dtype), wA_ref[...],       # bf16 x bf16 -> f32 acc
                      preferred_element_type=jnp.float32)        # (rows, 3C)
        qkv = _fillnan(qkv + bA_ref[...])                        # fillnan(c_attn(ln_1(x)))
        # Lane-dense, full-width stores (no per-head sub-128-lane masked stores).
        # The attention scale (and optional 1/(layer+1)) is folded into q here, once.
        q_ref[0] = (qkv[:, 0 * C:1 * C] * scale).astype(q_ref.dtype)
        k_ref[0] = qkv[:, 1 * C:2 * C].astype(k_ref.dtype)
        v_ref[0] = qkv[:, 2 * C:3 * C].astype(v_ref.dtype)

    return kernel


# ------------------- kernel 2: flash causal attention (per q tile) -------------------
def _make_flash_kernel(n_head, head_dim, tq, tk, matmul_dtype):
    H, hd = n_head, head_dim

    def kernel(q_ref, k_ref, v_ref, o_ref, m_sc, l_sc, acc_sc, q_sc):
        qi = pl.program_id(1)
        ki = pl.program_id(2)
        q_first = qi * tq
        k_first = ki * tk
        k_last = k_first + (tk - 1)

        @pl.when(ki == 0)
        def _init():
            m_sc[...] = jnp.full(m_sc.shape, -jnp.inf, dtype=jnp.float32)
            l_sc[...] = jnp.zeros(l_sc.shape, dtype=jnp.float32)
            acc_sc[...] = jnp.zeros(acc_sc.shape, dtype=jnp.float32)
            # Hoist the kv-invariant per-head extraction of q out of the kv loop
            # (q is already pre-scaled by kernel 1).
            q2d = q_ref[0]                                       # (tq, C)
            for h in range(H):
                q_sc[h] = q2d[:, h * hd:(h + 1) * hd]

        def accumulate(masked):
            k2d = k_ref[0]                                       # (tk, C)
            v2d = v_ref[0]                                       # (tk, C)
            if masked:
                # Mask built once per step, shared across all heads.
                q_pos = q_first + lax.broadcasted_iota(jnp.int32, (tq, tk), 0)
                k_pos = k_first + lax.broadcasted_iota(jnp.int32, (tq, tk), 1)
                causal = q_pos >= k_pos
            # Unrolled per-head loop over 2-D lane-dense slices: same MXU work as a
            # (H, tq, hd)-batched contraction, but avoids any in-kernel reshape /
            # transpose relayout and bounds live vreg pressure (v5e-friendly).
            for h in range(H):
                sl = slice(h * hd, (h + 1) * hd)
                s = lax.dot_general(q_sc[h], k2d[:, sl],
                                    (((1,), (1,)), ((), ())),
                                    preferred_element_type=jnp.float32)  # (tq, tk)
                s = jnp.where(jnp.isfinite(s), s, 0.0)           # fillnan(att)
                if masked:
                    s = jnp.where(causal, s, -jnp.inf)
                m_prev = m_sc[h]                                 # (tq, 1)
                m_new = jnp.maximum(m_prev, jnp.max(s, axis=-1, keepdims=True))
                alpha = jnp.exp(m_prev - m_new)
                p = jnp.exp(s - m_new)
                l_sc[h] = alpha * l_sc[h] + jnp.sum(p, axis=-1, keepdims=True)
                acc_sc[h] = alpha * acc_sc[h] + jnp.dot(
                    p.astype(matmul_dtype), v2d[:, sl],
                    preferred_element_type=jnp.float32)          # (tq, hd)
                m_sc[h] = m_new

        # Interior blocks (strictly below the diagonal): no iota / compare / select.
        @pl.when(q_first >= k_last)
        def _interior():
            accumulate(masked=False)

        # Blocks straddling the diagonal: apply the causal mask.
        @pl.when(jnp.logical_and(k_first <= q_first + (tq - 1), q_first < k_last))
        def _diagonal():
            accumulate(masked=True)
        # Blocks entirely in the causal future are skipped here, and their K/V DMA
        # is suppressed by the clamped index_map in the wrapper.

        @pl.when(ki == pl.num_programs(2) - 1)
        def _finalize():
            inv_l = pl.reciprocal(l_sc[...], approx=True)        # EUP, (H, tq, 1)
            y = _fillnan(acc_sc[...] * inv_l).astype(o_ref.dtype)  # fillnan(att @ v)
            # TODO(synk): replace the per-head 64-lane stores below with a single
            # lane-dense (tq, C) store once an unaligned lane-dim concat /
            # (H,tq,hd)->(tq,C) relayout is dependable in-kernel; unlike the old
            # qkv-kernel stores this runs only once per q tile (amortized over
            # the whole kv loop).
            for h in range(H):
                o_ref[0, :, h * hd:(h + 1) * hd] = y[h]

    return kernel


# ----------- kernel 3: c_proj + residual + ln_2 + MLP + residual -----------
def _make_proj_mlp_kernel():
    def kernel(x_ref, y_ref, wP_ref, bP_ref, g2_ref, b2_ref,
               wF_ref, bF_ref, wP2_ref, bP2_ref, o_ref):
        x = x_ref[0]                                             # (rows, C) f32 residual
        y = y_ref[0]                                             # (rows, C) bf16 attn out

        # attn.c_proj + fillnan (resid_dropout is identity: dropout=0.0 / eval)
        a = jnp.dot(y, wP_ref[...], preferred_element_type=jnp.float32) + bP_ref[...]
        x1 = _fillnan(x + _fillnan(a))                           # x = fillnan(x + attn(ln_1(x)))

        h = _layer_norm(x1, g2_ref[...], b2_ref[...])            # ln_2 in f32
        m = jnp.dot(h.astype(wF_ref.dtype), wF_ref[...],
                    preferred_element_type=jnp.float32) + bF_ref[...]
        m = _fillnan(_new_gelu(_fillnan(m)))                     # c_fc -> fillnan -> gelu -> fillnan
        m2 = jnp.dot(m.astype(wP2_ref.dtype), wP2_ref[...],
                     preferred_element_type=jnp.float32) + bP2_ref[...]
        o_ref[0] = _fillnan(x1 + _fillnan(m2)).astype(o_ref.dtype)   # x = fillnan(x + mlp(ln_2(x)))

    return kernel


# --------------------------------- wrapper ---------------------------------
def block_forward(x, params, *, n_head, idx_layer=0,
                  scale_attn_by_inverse_layer_idx=False,
                  matmul_dtype=jnp.bfloat16,     # bf16-native MXU path on v5e/v6e/v7x
                  row_block=256,                 # row tile for kernels 1 and 3
                  q_block=256, kv_block=256,     # attention tiles
                  weight_buffers=1,              # single-buffer grid-invariant weights
                  vmem_limit_bytes=None):        # None -> compiler default (don't blanket-request 64 MiB)
    """GPT-2 Block forward. x: (B, T, C) float32 -> (B, T, C) float32."""
    B, T, C = x.shape
    assert C % n_head == 0
    hd = C // n_head

    r = min(row_block, T)
    tq = min(q_block, T)
    tk = min(kv_block, T)
    assert T % r == 0 and T % tq == 0 and T % tk == 0, \
        "sequence length must divide the row / q / kv tile sizes"
    n_r, n_q, n_k = T // r, T // tq, T // tk

    scale = 1.0 / math.sqrt(hd)
    if scale_attn_by_inverse_layer_idx:
        scale = scale / float(idx_layer + 1)

    mdt = jnp.dtype(matmul_dtype)
    # Big projection weights are stored / streamed in the matmul dtype (bf16 by
    # default): native MXU dtype on all three generations, half the HBM traffic and
    # half the resident VMEM; f32 accumulation is kept via preferred_element_type.
    # LN params and biases stay f32: <0.1% of the weight bytes, better numerics,
    # and no per-tile up-casts inside the kernels.
    wA = params["w_attn"].astype(mdt)
    wP = params["w_proj"].astype(mdt)
    wF = params["w_fc"].astype(mdt)
    wP2 = params["w_proj2"].astype(mdt)

    def cparams(dims):
        kw = dict(dimension_semantics=dims)
        if vmem_limit_bytes is not None:
            kw["vmem_limit_bytes"] = vmem_limit_bytes
        return pltpu.CompilerParams(**kw)

    # ---- 1) ln_1 + c_attn -> lane-dense (B, T, C) q/k/v slabs (q pre-scaled) ----
    q, k, v = pl.pallas_call(
        _make_qkv_kernel(C, scale),
        out_shape=tuple(jax.ShapeDtypeStruct((B, T, C), mdt) for _ in range(3)),
        grid_spec=pltpu.PrefetchScalarGridSpec(
            num_scalar_prefetch=0,
            grid=(B, n_r),
            in_specs=[
                pl.BlockSpec((1, r, C), lambda b, i: (b, i, 0)),     # x
                _const_spec((1, C), weight_buffers),                 # ln_1.weight
                _const_spec((1, C), weight_buffers),                 # ln_1.bias
                _const_spec((C, 3 * C), weight_buffers),             # c_attn.weight (in,out)
                _const_spec((1, 3 * C), weight_buffers),             # c_attn.bias
            ],
            out_specs=[pl.BlockSpec((1, r, C), lambda b, i: (b, i, 0))
                       for _ in range(3)],
        ),
        compiler_params=cparams(("parallel", "parallel")),
    )(x, params["ln1_g"], params["ln1_b"], wA, params["b_attn"])

    # ---- 2) flash causal attention over a (B, q-tile, kv-tile) grid ----------
    def q_map(b, qi, ki):
        return (b, qi, 0)

    def kv_map(b, qi, ki):
        # Causal DMA clamp: kv blocks entirely in the future of this q tile are
        # mapped onto the last block the tile actually needs, so the block index
        # stops changing and the pipeline issues no new K/V DMA for them (their
        # compute is skipped by pl.when inside the kernel).
        last_needed = (qi * tq + (tq - 1)) // tk
        return (b, jnp.minimum(ki, last_needed), 0)

    itemsize = mdt.itemsize
    y = pl.pallas_call(
        _make_flash_kernel(n_head, hd, tq, tk, mdt),
        out_shape=jax.ShapeDtypeStruct((B, T, C), mdt),
        grid_spec=pltpu.PrefetchScalarGridSpec(
            num_scalar_prefetch=0,
            grid=(B, n_q, n_k),
            in_specs=[
                pl.BlockSpec((1, tq, C), q_map),
                pl.BlockSpec((1, tk, C), kv_map),
                pl.BlockSpec((1, tk, C), kv_map),
            ],
            out_specs=pl.BlockSpec((1, tq, C), q_map),
            scratch_shapes=[
                pltpu.VMEM((n_head, tq, 1), jnp.float32),   # running max
                pltpu.VMEM((n_head, tq, 1), jnp.float32),   # running denominator
                pltpu.VMEM((n_head, tq, hd), jnp.float32),  # running numerator
                pltpu.VMEM((n_head, tq, hd), mdt),          # per-head q (kv-invariant)
            ],
        ),
        compiler_params=cparams(("parallel", "parallel", "arbitrary")),
        cost_estimate=pl.CostEstimate(
            flops=int(2 * B * T * T * C),                   # causal: ~half of dense 4*T*T*C
            transcendentals=int(B * n_head * T * T // 2),
            # Q read + Y write + causally-clamped K/V streams (each ~ (n_q+1)/2 tiles/q-tile)
            bytes_accessed=int(B * T * C * itemsize * (2 + (n_q + 1)))),
    )(q, k, v)

    # ---- 3) attn.c_proj + residual + ln_2 + MLP + residual -------------------
    out = pl.pallas_call(
        _make_proj_mlp_kernel(),
        out_shape=jax.ShapeDtypeStruct((B, T, C), x.dtype),
        grid_spec=pltpu.PrefetchScalarGridSpec(
            num_scalar_prefetch=0,
            grid=(B, n_r),
            in_specs=[
                pl.BlockSpec((1, r, C), lambda b, i: (b, i, 0)),     # x (residual)
                pl.BlockSpec((1, r, C), lambda b, i: (b, i, 0)),     # attention output
                _const_spec((C, C), weight_buffers),                 # attn.c_proj.weight
                _const_spec((1, C), weight_buffers),                 # attn.c_proj.bias
                _const_spec((1, C), weight_buffers),                 # ln_2.weight
                _const_spec((1, C), weight_buffers),                 # ln_2.bias
                _const_spec((C, 4 * C), weight_buffers),             # mlp.c_fc.weight
                _const_spec((1, 4 * C), weight_buffers),             # mlp.c_fc.bias
                _const_spec((4 * C, C), weight_buffers),             # mlp.c_proj.weight
                _const_spec((1, C), weight_buffers),                 # mlp.c_proj.bias
            ],
            out_specs=pl.BlockSpec((1, r, C), lambda b, i: (b, i, 0)),
        ),
        compiler_params=cparams(("parallel", "parallel")),
    )(x, y, wP, params["b_proj"], params["ln2_g"], params["ln2_b"],
      wF, params["b_fc"], wP2, params["b_proj2"])

    # TODO(synk): for C >= 1280 on v7x (64 MiB VMEM) the full-block c_fc/c_proj
    # weights no longer fit; add a reduction grid axis (or emit_pipeline) over the
    # 4C hidden dimension of the MLP matmuls in kernel 3.
    return out


# --------------------------- pure-JAX reference ---------------------------
def block_reference(x, params, *, n_head, idx_layer=0,
                    scale_attn_by_inverse_layer_idx=False):
    B, T, C = x.shape
    hd = C // n_head
    scale = 1.0 / math.sqrt(hd)
    if scale_attn_by_inverse_layer_idx:
        scale = scale / float(idx_layer + 1)

    h = _layer_norm(x, params["ln1_g"], params["ln1_b"])
    qkv = _fillnan(h @ params["w_attn"] + params["b_attn"])
    q, k, v = jnp.split(qkv, 3, axis=-1)
    q = q.reshape(B, T, n_head, hd).transpose(0, 2, 1, 3)
    k = k.reshape(B, T, n_head, hd).transpose(0, 2, 1, 3)
    v = v.reshape(B, T, n_head, hd).transpose(0, 2, 1, 3)
    att = _fillnan(jnp.einsum('bhqd,bhkd->bhqk', q, k) * scale)
    mask = jnp.tril(jnp.ones((T, T), dtype=bool))
    att = jnp.where(mask[None, None], att, -jnp.inf)
    att = _fillnan(jax.nn.softmax(att, axis=-1))
    y = _fillnan(jnp.einsum('bhqk,bhkd->bhqd', att, v))
    y = y.transpose(0, 2, 1, 3).reshape(B, T, C)
    x1 = _fillnan(x + _fillnan(y @ params["w_proj"] + params["b_proj"]))
    h2 = _layer_norm(x1, params["ln2_g"], params["ln2_b"])
    m = _fillnan(_new_gelu(_fillnan(h2 @ params["w_fc"] + params["b_fc"])))
    m2 = _fillnan(m @ params["w_proj2"] + params["b_proj2"])
    return _fillnan(x1 + m2)


if __name__ == "__main__":
    # Small config consistent with the module: B=2, T=8, C=n_embd=32, n_head=4
    B, T, C = 2, 8, 32
    n_head = 4
    idx_layer = 0
    scale_attn_by_inverse_layer_idx = False
    # dropout = 0.0 (eval): attn_dropout / resid_dropout / mlp dropout are identity

    key = jax.random.PRNGKey(0)
    ks = jax.random.split(key, 13)

    x = jax.random.normal(ks[0], (B, T, C), dtype=jnp.float32)

    params = dict(
        ln1_g=1.0 + 0.1 * jax.random.normal(ks[1], (1, C), dtype=jnp.float32),
        ln1_b=0.1 * jax.random.normal(ks[2], (1, C), dtype=jnp.float32),
        w_attn=0.02 * jax.random.normal(ks[3], (C, 3 * C), dtype=jnp.float32),
        b_attn=0.01 * jax.random.normal(ks[4], (1, 3 * C), dtype=jnp.float32),
        w_proj=0.02 * jax.random.normal(ks[5], (C, C), dtype=jnp.float32),
        b_proj=0.01 * jax.random.normal(ks[6], (1, C), dtype=jnp.float32),
        ln2_g=1.0 + 0.1 * jax.random.normal(ks[7], (1, C), dtype=jnp.float32),
        ln2_b=0.1 * jax.random.normal(ks[8], (1, C), dtype=jnp.float32),
        w_fc=0.02 * jax.random.normal(ks[9], (C, 4 * C), dtype=jnp.float32),
        b_fc=0.01 * jax.random.normal(ks[10], (1, 4 * C), dtype=jnp.float32),
        w_proj2=0.02 * jax.random.normal(ks[11], (4 * C, C), dtype=jnp.float32),
        b_proj2=0.01 * jax.random.normal(ks[12], (1, C), dtype=jnp.float32),
    )

    out = block_forward(
        x, params, n_head=n_head, idx_layer=idx_layer,
        scale_attn_by_inverse_layer_idx=scale_attn_by_inverse_layer_idx)
    out = jax.block_until_ready(out)

    ref = block_reference(
        x, params, n_head=n_head, idx_layer=idx_layer,
        scale_attn_by_inverse_layer_idx=scale_attn_by_inverse_layer_idx)

    assert out.shape == (B, T, C)
    max_err = float(jnp.max(jnp.abs(out - ref)))
    # bf16 storage for weights / q / k / v / y (f32 accumulation) vs. an all-f32
    # reference: allow a bf16-sized tolerance.
    assert max_err < 2e-2, f"mismatch vs f32 reference (max abs err {max_err})"
    print("KERNEL_OK")
</pallas_src>

<mosaic_0001>
module attributes {stable_mosaic.version = 11 : i64} {
  func.func @kernel(%arg0: i32, %arg1: i32, %arg2: memref<1x8x32xf32, #tpu.memory_space<vmem>>, %arg3: memref<1x32xf32, #tpu.memory_space<vmem>>, %arg4: memref<1x32xf32, #tpu.memory_space<vmem>>, %arg5: memref<32x96xbf16, #tpu.memory_space<vmem>>, %arg6: memref<1x96xf32, #tpu.memory_space<vmem>>, %arg7: memref<1x8x32xbf16, #tpu.memory_space<vmem>>, %arg8: memref<1x8x32xbf16, #tpu.memory_space<vmem>>, %arg9: memref<1x8x32xbf16, #tpu.memory_space<vmem>>) attributes {dimension_semantics = [#tpu.dimension_semantics<parallel>, #tpu.dimension_semantics<parallel>], iteration_bounds = array<i64: 2, 1>, scalar_prefetch = 0 : i64, scratch_operands = 0 : i64, tpu.core_type = #tpu.core_type<tc>, window_params = [{transform_indices = @transform_0, window_bounds = array<i64: 1, 8, 32>}, {pipeline_mode = #tpu.pipeline_mode<synchronous>, transform_indices = @transform_1, window_bounds = array<i64: 1, 32>}, {pipeline_mode = #tpu.pipeline_mode<synchronous>, transform_indices = @transform_2, window_bounds = array<i64: 1, 32>}, {pipeline_mode = #tpu.pipeline_mode<synchronous>, transform_indices = @transform_3, window_bounds = array<i64: 32, 96>}, {pipeline_mode = #tpu.pipeline_mode<synchronous>, transform_indices = @transform_4, window_bounds = array<i64: 1, 96>}, {transform_indices = @transform_5, window_bounds = array<i64: 1, 8, 32>}, {transform_indices = @transform_6, window_bounds = array<i64: 1, 8, 32>}, {transform_indices = @transform_7, window_bounds = array<i64: 1, 8, 32>}]} {
    %c0 = arith.constant 0 : index
    %c0_0 = arith.constant 0 : index
    %c0_1 = arith.constant 0 : index
    %0 = vector.load %arg2[%c0, %c0_0, %c0_1] : memref<1x8x32xf32, #tpu.memory_space<vmem>>, vector<1x8x32xf32>
    %1 = vector.shape_cast %0 : vector<1x8x32xf32> to vector<8x32xf32>
    %c0_2 = arith.constant 0 : index
    %c0_3 = arith.constant 0 : index
    %2 = vector.load %arg3[%c0_2, %c0_3] : memref<1x32xf32, #tpu.memory_space<vmem>>, vector<1x32xf32>
    %c0_4 = arith.constant 0 : index
    %c0_5 = arith.constant 0 : index
    %3 = vector.load %arg4[%c0_4, %c0_5] : memref<1x32xf32, #tpu.memory_space<vmem>>, vector<1x32xf32>
    %cst = arith.constant dense<0.000000e+00> : vector<8xf32>
    %4 = vector.multi_reduction <add>, %1, %cst [1] : vector<8x32xf32> to vector<8xf32>
    %5 = vector.shape_cast %4 : vector<8xf32> to vector<8x1xf32>
    %cst_6 = arith.constant 3.200000e+01 : f32
    %6 = vector.broadcast %cst_6 : f32 to vector<8x1xf32>
    %7 = arith.divf %5, %6 : vector<8x1xf32>
    %8 = vector.broadcast %7 : vector<8x1xf32> to vector<8x32xf32>
    %9 = arith.subf %1, %8 : vector<8x32xf32>
    %10 = arith.mulf %9, %9 : vector<8x32xf32>
    %cst_7 = arith.constant dense<0.000000e+00> : vector<8xf32>
    %11 = vector.multi_reduction <add>, %10, %cst_7 [1] : vector<8x32xf32> to vector<8xf32>
    %12 = vector.shape_cast %11 : vector<8xf32> to vector<8x1xf32>
    %cst_8 = arith.constant 3.200000e+01 : f32
    %13 = vector.broadcast %cst_8 : f32 to vector<8x1xf32>
    %14 = arith.divf %12, %13 : vector<8x1xf32>
    %cst_9 = arith.constant 9.99999974E-6 : f32
    %15 = vector.broadcast %cst_9 : f32 to vector<8x1xf32>
    %16 = arith.addf %14, %15 : vector<8x1xf32>
    %17 = math.rsqrt %16 : vector<8x1xf32>
    %18 = vector.broadcast %17 : vector<8x1xf32> to vector<8x32xf32>
    %19 = arith.mulf %9, %18 : vector<8x32xf32>
    %20 = vector.broadcast %2 : vector<1x32xf32> to vector<8x32xf32>
    %21 = arith.mulf %19, %20 : vector<8x32xf32>
    %22 = vector.broadcast %3 : vector<1x32xf32> to vector<8x32xf32>
    %23 = arith.addf %21, %22 : vector<8x32xf32>
    %24 = arith.truncf %23 : vector<8x32xf32> to vector<8x32xbf16>
    %c0_10 = arith.constant 0 : index
    %c0_11 = arith.constant 0 : index
    %25 = vector.load %arg5[%c0_10, %c0_11] : memref<32x96xbf16, #tpu.memory_space<vmem>>, vector<32x96xbf16>
    %cst_12 = arith.constant dense<0.000000e+00> : vector<8x96xf32>
    %26 = tpu.matmul %24, %25, %cst_12 {dimension_numbers = #tpu.dot_dimension_numbers<[1], [0], [0], [1], [0, 0, 1, 1], [], []>} : vector<8x32xbf16>, vector<32x96xbf16>, vector<8x96xf32> -> vector<8x96xf32>
    %c0_13 = arith.constant 0 : index
    %c0_14 = arith.constant 0 : index
    %27 = vector.load %arg6[%c0_13, %c0_14] : memref<1x96xf32, #tpu.memory_space<vmem>>, vector<1x96xf32>
    %28 = vector.broadcast %27 : vector<1x96xf32> to vector<8x96xf32>
    %29 = arith.addf %26, %28 : vector<8x96xf32>
    %30 = tpu.weird %29 : vector<8x96xf32> -> vector<8x96xi1>
    %cst_15 = arith.constant dense<true> : vector<8x96xi1>
    %31 = arith.xori %30, %cst_15 : vector<8x96xi1>
    %cst_16 = arith.constant 0.000000e+00 : f32
    %32 = vector.broadcast %cst_16 : f32 to vector<8x96xf32>
    %33 = arith.select %31, %29, %32 : vector<8x96xi1>, vector<8x96xf32>
    %34 = vector.extract_strided_slice %33 {offsets = [0, 0], sizes = [8, 32], strides = [1, 1]} : vector<8x96xf32> to vector<8x32xf32>
    %cst_17 = arith.constant 0.353553385 : f32
    %35 = vector.broadcast %cst_17 : f32 to vector<8x32xf32>
    %36 = arith.mulf %34, %35 : vector<8x32xf32>
    %37 = arith.truncf %36 : vector<8x32xf32> to vector<8x32xbf16>
    %c0_18 = arith.constant 0 : index
    %c0_19 = arith.constant 0 : index
    %c0_20 = arith.constant 0 : index
    %38 = vector.load %arg7[%c0_18, %c0_19, %c0_20] : memref<1x8x32xbf16, #tpu.memory_space<vmem>>, vector<1x8x32xbf16>
    %39 = vector.shape_cast %38 : vector<1x8x32xbf16> to vector<8x32xbf16>
    %40 = vector.shape_cast %37 : vector<8x32xbf16> to vector<1x8x32xbf16>
    tpu.vector_store %arg7[%c0_18, %c0_19, %c0_20], %40 {strides = array<i32>} : memref<1x8x32xbf16, #tpu.memory_space<vmem>>, vector<1x8x32xbf16>,
    %41 = vector.extract_strided_slice %33 {offsets = [0, 32], sizes = [8, 32], strides = [1, 1]} : vector<8x96xf32> to vector<8x32xf32>
    %42 = arith.truncf %41 : vector<8x32xf32> to vector<8x32xbf16>
    %c0_21 = arith.constant 0 : index
    %c0_22 = arith.constant 0 : index
    %c0_23 = arith.constant 0 : index
    %43 = vector.load %arg8[%c0_21, %c0_22, %c0_23] : memref<1x8x32xbf16, #tpu.memory_space<vmem>>, vector<1x8x32xbf16>
    %44 = vector.shape_cast %43 : vector<1x8x32xbf16> to vector<8x32xbf16>
    %45 = vector.shape_cast %42 : vector<8x32xbf16> to vector<1x8x32xbf16>
    tpu.vector_store %arg8[%c0_21, %c0_22, %c0_23], %45 {strides = array<i32>} : memref<1x8x32xbf16, #tpu.memory_space<vmem>>, vector<1x8x32xbf16>,
    %46 = vector.extract_strided_slice %33 {offsets = [0, 64], sizes = [8, 32], strides = [1, 1]} : vector<8x96xf32> to vector<8x32xf32>
    %47 = arith.truncf %46 : vector<8x32xf32> to vector<8x32xbf16>
    %c0_24 = arith.constant 0 : index
    %c0_25 = arith.constant 0 : index
    %c0_26 = arith.constant 0 : index
    %48 = vector.load %arg9[%c0_24, %c0_25, %c0_26] : memref<1x8x32xbf16, #tpu.memory_space<vmem>>, vector<1x8x32xbf16>
    %49 = vector.shape_cast %48 : vector<1x8x32xbf16> to vector<8x32xbf16>
    %50 = vector.shape_cast %47 : vector<8x32xbf16> to vector<1x8x32xbf16>
    tpu.vector_store %arg9[%c0_24, %c0_25, %c0_26], %50 {strides = array<i32>} : memref<1x8x32xbf16, #tpu.memory_space<vmem>>, vector<1x8x32xbf16>,
    return
  }
  func.func @transform_0(%arg0: i32, %arg1: i32) -> (i32, i32, i32) {
    %c0_i32 = arith.constant 0 : i32
    %c0_i32_0 = arith.constant 0 : i32
    return %arg0, %arg1, %c0_i32 : i32, i32, i32
  }
  func.func @transform_1(%arg0: i32, %arg1: i32) -> (i32, i32) {
    %c0_i32 = arith.constant 0 : i32
    %c0_i32_0 = arith.constant 0 : i32
    %c0_i32_1 = arith.constant 0 : i32
    return %c0_i32, %c0_i32_0 : i32, i32
  }
  func.func @transform_2(%arg0: i32, %arg1: i32) -> (i32, i32) {
    %c0_i32 = arith.constant 0 : i32
    %c0_i32_0 = arith.constant 0 : i32
    %c0_i32_1 = arith.constant 0 : i32
    return %c0_i32, %c0_i32_0 : i32, i32
  }
  func.func @transform_3(%arg0: i32, %arg1: i32) -> (i32, i32) {
    %c0_i32 = arith.constant 0 : i32
    %c0_i32_0 = arith.constant 0 : i32
    %c0_i32_1 = arith.constant 0 : i32
    return %c0_i32, %c0_i32_0 : i32, i32
  }
  func.func @transform_4(%arg0: i32, %arg1: i32) -> (i32, i32) {
    %c0_i32 = arith.constant 0 : i32
    %c0_i32_0 = arith.constant 0 : i32
    %c0_i32_1 = arith.constant 0 : i32
    return %c0_i32, %c0_i32_0 : i32, i32
  }
  func.func @transform_5(%arg0: i32, %arg1: i32) -> (i32, i32, i32) {
    %c0_i32 = arith.constant 0 : i32
    %c0_i32_0 = arith.constant 0 : i32
    return %arg0, %arg1, %c0_i32 : i32, i32, i32
  }
  func.func @transform_6(%arg0: i32, %arg1: i32) -> (i32, i32, i32) {
    %c0_i32 = arith.constant 0 : i32
    %c0_i32_0 = arith.constant 0 : i32
    return %arg0, %arg1, %c0_i32 : i32, i32, i32
  }
  func.func @transform_7(%arg0: i32, %arg1: i32) -> (i32, i32, i32) {
    %c0_i32 = arith.constant 0 : i32
    %c0_i32_0 = arith.constant 0 : i32
    return %arg0, %arg1, %c0_i32 : i32, i32, i32
  }
}

</mosaic_0001>

<llo_original>
// kernel: tpu_custom_call.1
$region0: #{tpu_custom_call.1}
  #allocation0 [shape = 'u32[]', space=smem, size = 0x4, offset = 0x4, fixed_abs, tag = 'smem constant byte address 0x4 - core index']
  #allocation1 [shape = 'u32[144,128]{1,0:T(1,128)}', space=vmem, size = 0x12000, scoped, tag = 'internal scratch']
  %s0 = inlined_call_operand.hbm [shape: f32[2,8,32], index: 0, kind: input, shape index: {}]
  %s1 = inlined_call_operand.vmem [shape: f32[1,32], index: 1, kind: input, shape index: {}]
  %s2 = inlined_call_operand.vmem [shape: f32[1,32], index: 2, kind: input, shape index: {}]
  %s3 = inlined_call_operand.hbm [shape: bf16[32,96], index: 3, kind: input, shape index: {}]
  %s4 = inlined_call_operand.vmem [shape: f32[1,96], index: 4, kind: input, shape index: {}]
  %s5 = inlined_call_operand.hbm [shape: bf16[2,8,32], index: 5, kind: output, shape index: {0}]
  %s6 = inlined_call_operand.hbm [shape: bf16[2,8,32], index: 6, kind: output, shape index: {1}]
  %s7 = inlined_call_operand.hbm [shape: bf16[2,8,32], index: 7, kind: output, shape index: {2}]
  %8 = xla_tuple %s5, %s6, %s7
  %s9 = sld [smem:[#allocation0]]
  $region77: #{tpu_custom_call.1} parent=0
    _
  %s11 = ssub.s32 1, %s9
  %s12 = scalar_select 0, %s11, %s9
  $region1: #{tpu_custom_call.1} parent=0
    #allocation2 [shape = 'u8[8192]{0}', space=vmem, size = 0x2000, scoped, tag = 'input window, operand 0']
    #allocation3 [shape = 's32[2]{0}', space=sflag, size = 0x8, scoped, tag = 'scoped memory for tpu_custom_call.1']
    #allocation4 [shape = 's32[2]{0}', space=sflag, size = 0x8, scoped, tag = 'scoped memory for tpu_custom_call.1']
    #allocation5 [shape = 'u8[8192]{0}', space=vmem, size = 0x2000, scoped, tag = 'input window, operand 3, single buffered']
    #allocation6 [shape = 's32[1]{0}', space=sflag, size = 0x4, scoped, tag = 'scoped memory for tpu_custom_call.1']
    #allocation7 [shape = 'u8[4096]{0}', space=vmem, size = 0x1000, scoped, tag = 'output window, operand 0']
    #allocation8 [shape = 'u8[4096]{0}', space=vmem, size = 0x1000, scoped, tag = 'output window, operand 1']
    #allocation9 [shape = 's32[2]{0}', space=sflag, size = 0x8, scoped, tag = 'scoped memory for tpu_custom_call.1']
    #allocation10 [shape = 'u8[4096]{0}', space=vmem, size = 0x1000, scoped, tag = 'output window, operand 2']
    %13 = vsyncpa [#allocation3], 0
    %s14 = scalar_lea.sflag [#allocation3], 1
    %15 = vsyncpa %s14, 0
    %16 = vsyncpa [#allocation6], 0
    %17 = vsyncpa [#allocation4], 0
    %s18 = scalar_lea.sflag [#allocation4], 1
    %19 = vsyncpa %s18, 0
    %20 = vsyncpa [#allocation9], 0
    %s21 = scalar_lea.sflag [#allocation9], 1
    %22 = vsyncpa %s21, 0
    loop: start=0, step=1, limit=4
    $region2: #{tpu_custom_call.1} parent=1 // loop_pre_header
      _
    $region3: #{tpu_custom_call.1} parent=1 // loop_header
      %s24 = sphi 0, %s28
      %p25 = scmp.ge.s32.totalorder %s24, 4
      %s31 = sphi 0, %s43
      %s32 = sphi 0, %s39
      %s33 = sphi 0, %s31
      %s34 = sphi 0, %s32
      %s35 = sphi 0, %s33
      %s36 = sphi 0, %s34
      %s48 = sphi 0, %s50
      %s51 = sphi 0, %s48
      %s52 = sphi 0, %s51
      %s68 = sphi 0, %s52
      %s72 = sphi 0, %s72
      %s74 = sphi 0, %s72
      %s75 = sphi 0, %s74
      %s89 = sphi 0, %s75
      %s93 = sphi 0, %s93
      %s95 = sphi 0, %s93
      %s96 = sphi 0, %s95
      %s110 = sphi 0, %s96
      %s114 = sphi 0, %s114
      %s116 = sphi 0, %s114
      %s117 = sphi 0, %s116
      %s131 = sphi 0, %s117
      %s135 = sphi 0, %s135
      %s137 = sphi 0, %s135
      %s138 = sphi 0, %s137
      %s152 = sphi 0, %s138
      %s160 = sphi 0, %s162
      %s163 = sphi 0, %s160
      %s164 = sphi 0, %s163
      %s180 = sphi 0, %s164
      %s188 = sphi 0, %s190
      %s191 = sphi 0, %s188
      %s192 = sphi 0, %s191
      %s208 = sphi 0, %s192
      %s216 = sphi 0, %s218
      %s219 = sphi 0, %s216
      %s220 = sphi 0, %s219
      %s236 = sphi 0, %s220
    $region4: #{tpu_custom_call.1} parent=1 // loop_header_branch
      %27 = sbr.rel (%p25) target = $region8
    $region5: #{tpu_custom_call.1} parent=1 // loop_body
      %s29 = ssub.s32 %s24, 1
      %s30 = ssub.s32 %s24, 2
      %s37 = sadd.s32 1, %s32
      %p38 = scmp.ge.s32.totalorder %s37, 1
      %s39 = scalar_select %p38, 0, %s37
      %s40 = sadd.s32 1, %s31
      %s41 = scalar_select %p38, %s40, %s31
      %p42 = scmp.ge.s32.totalorder %s41, 2
      %s43 = scalar_select %p42, 0, %s41
      %s44 = ssub.s32 %s31, %s43
      %s45 = ssub.s32 %s32, %s39
      %s46 = sor.u32 %s44, %s45
      %p47 = scmp.eq.s32.totalorder %s46, 0
      %s49 = sadd.s32 %s48, 1
      %s50 = scalar_select %p47, %s48, %s49
      %p53 = pneg %p47
      %p54 = scmp.eq.s32.totalorder %s24, 1
      %p55 = por %p53, %p54
      %p56 = scmp.ne.s32.totalorder %s48, %s51
      %p57 = scmp.eq.s32.totalorder %s24, 0
      %p58 = por %p56, %p57
      %p59 = scmp.ne.s32.totalorder %s48, %s51
      %p60 = scmp.eq.s32.totalorder %s29, 1
      %p61 = por %p59, %p60
      %p62 = scmp.ne.s32.totalorder %s51, %s52
      %p63 = scmp.eq.s32.totalorder %s29, 0
      %p64 = por %p62, %p63
      %p65 = scmp.ne.s32.totalorder %s51, %s52
      %p66 = scmp.eq.s32.totalorder %s30, 1
      %p67 = por %p65, %p66
      %p69 = scmp.ne.s32.totalorder %s52, %s68
      %p70 = scmp.eq.s32.totalorder %s30, 0
      %p71 = por %p69, %p70
      %s73 = sadd.s32 %s72, 1
      %p76 = scmp.eq.s32.totalorder %s24, 1
      %p77 = scmp.ne.s32.totalorder %s72, %s74
      %p78 = scmp.eq.s32.totalorder %s24, 0
      %p79 = por %p77, %p78
      %p80 = scmp.ne.s32.totalorder %s72, %s74
      %p81 = scmp.eq.s32.totalorder %s29, 1
      %p82 = por %p80, %p81
      %p83 = scmp.ne.s32.totalorder %s74, %s75
      %p84 = scmp.eq.s32.totalorder %s29, 0
      %p85 = por %p83, %p84
      %p86 = scmp.ne.s32.totalorder %s74, %s75
      %p87 = scmp.eq.s32.totalorder %s30, 1
      %p88 = por %p86, %p87
      %p90 = scmp.ne.s32.totalorder %s75, %s89
      %p91 = scmp.eq.s32.totalorder %s30, 0
      %p92 = por %p90, %p91
      %s94 = sadd.s32 %s93, 1
      %p97 = scmp.eq.s32.totalorder %s24, 1
      %p98 = scmp.ne.s32.totalorder %s93, %s95
      %p99 = scmp.eq.s32.totalorder %s24, 0
      %p100 = por %p98, %p99
      %p101 = scmp.ne.s32.totalorder %s93, %s95
      %p102 = scmp.eq.s32.totalorder %s29, 1
      %p103 = por %p101, %p102
      %p104 = scmp.ne.s32.totalorder %s95, %s96
      %p105 = scmp.eq.s32.totalorder %s29, 0
      %p106 = por %p104, %p105
      %p107 = scmp.ne.s32.totalorder %s95, %s96
      %p108 = scmp.eq.s32.totalorder %s30, 1
      %p109 = por %p107, %p108
      %p111 = scmp.ne.s32.totalorder %s96, %s110
      %p112 = scmp.eq.s32.totalorder %s30, 0
      %p113 = por %p111, %p112
      %s115 = sadd.s32 %s114, 1
      %p118 = scmp.eq.s32.totalorder %s24, 1
      %p119 = scmp.ne.s32.totalorder %s114, %s116
      %p120 = scmp.eq.s32.totalorder %s24, 0
      %p121 = por %p119, %p120
      %p122 = scmp.ne.s32.totalorder %s114, %s116
      %p123 = scmp.eq.s32.totalorder %s29, 1
      %p124 = por %p122, %p123
      %p125 = scmp.ne.s32.totalorder %s116, %s117
      %p126 = scmp.eq.s32.totalorder %s29, 0
      %p127 = por %p125, %p126
      %p128 = scmp.ne.s32.totalorder %s116, %s117
      %p129 = scmp.eq.s32.totalorder %s30, 1
      %p130 = por %p128, %p129
      %p132 = scmp.ne.s32.totalorder %s117, %s131
      %p133 = scmp.eq.s32.totalorder %s30, 0
      %p134 = por %p132, %p133
      %s136 = sadd.s32 %s135, 1
      %p139 = scmp.eq.s32.totalorder %s24, 1
      %p140 = scmp.ne.s32.totalorder %s135, %s137
      %p141 = scmp.eq.s32.totalorder %s24, 0
      %p142 = por %p140, %p141
      %p143 = scmp.ne.s32.totalorder %s135, %s137
      %p144 = scmp.eq.s32.totalorder %s29, 1
      %p145 = por %p143, %p144
      %p146 = scmp.ne.s32.totalorder %s137, %s138
      %p147 = scmp.eq.s32.totalorder %s29, 0
      %p148 = por %p146, %p147
      %p149 = scmp.ne.s32.totalorder %s137, %s138
      %p150 = scmp.eq.s32.totalorder %s30, 1
      %p151 = por %p149, %p150
      %p153 = scmp.ne.s32.totalorder %s138, %s152
      %p154 = scmp.eq.s32.totalorder %s30, 0
      %p155 = por %p153, %p154
      %s156 = ssub.s32 %s31, %s43
      %s157 = ssub.s32 %s32, %s39
      %s158 = sor.u32 %s156, %s157
      %p159 = scmp.eq.s32.totalorder %s158, 0
      %s161 = sadd.s32 %s160, 1
      %s162 = scalar_select %p159, %s160, %s161
      %p165 = pneg %p159
      %p166 = scmp.eq.s32.totalorder %s24, 1
      %p167 = por %p165, %p166
      %p168 = scmp.ne.s32.totalorder %s160, %s163
      %p169 = scmp.eq.s32.totalorder %s24, 0
      %p170 = por %p168, %p169
      %p171 = scmp.ne.s32.totalorder %s160, %s163
      %p172 = scmp.eq.s32.totalorder %s29, 1
      %p173 = por %p171, %p172
      %p174 = scmp.ne.s32.totalorder %s163, %s164
      %p175 = scmp.eq.s32.totalorder %s29, 0
      %p176 = por %p174, %p175
      %p177 = scmp.ne.s32.totalorder %s163, %s164
      %p178 = scmp.eq.s32.totalorder %s30, 1
      %p179 = por %p177, %p178
      %p181 = scmp.ne.s32.totalorder %s164, %s180
      %p182 = scmp.eq.s32.totalorder %s30, 0
      %p183 = por %p181, %p182
      %s184 = ssub.s32 %s31, %s43
      %s185 = ssub.s32 %s32, %s39
      %s186 = sor.u32 %s184, %s185
      %p187 = scmp.eq.s32.totalorder %s186, 0
      %s189 = sadd.s32 %s188, 1
      %s190 = scalar_select %p187, %s188, %s189
      %p193 = pneg %p187
      %p194 = scmp.eq.s32.totalorder %s24, 1
      %p195 = por %p193, %p194
      %p196 = scmp.ne.s32.totalorder %s188, %s191
      %p197 = scmp.eq.s32.totalorder %s24, 0
      %p198 = por %p196, %p197
      %p199 = scmp.ne.s32.totalorder %s188, %s191
      %p200 = scmp.eq.s32.totalorder %s29, 1
      %p201 = por %p199, %p200
      %p202 = scmp.ne.s32.totalorder %s191, %s192
      %p203 = scmp.eq.s32.totalorder %s29, 0
      %p204 = por %p202, %p203
      %p205 = scmp.ne.s32.totalorder %s191, %s192
      %p206 = scmp.eq.s32.totalorder %s30, 1
      %p207 = por %p205, %p206
      %p209 = scmp.ne.s32.totalorder %s192, %s208
      %p210 = scmp.eq.s32.totalorder %s30, 0
      %p211 = por %p209, %p210
      %s212 = ssub.s32 %s31, %s43
      %s213 = ssub.s32 %s32, %s39
      %s214 = sor.u32 %s212, %s213
      %p215 = scmp.eq.s32.totalorder %s214, 0
      %s217 = sadd.s32 %s216, 1
      %s218 = scalar_select %p215, %s216, %s217
      %p221 = pneg %p215
      %p222 = scmp.eq.s32.totalorder %s24, 1
      %p223 = por %p221, %p222
      %p224 = scmp.ne.s32.totalorder %s216, %s219
      %p225 = scmp.eq.s32.totalorder %s24, 0
      %p226 = por %p224, %p225
      %p227 = scmp.ne.s32.totalorder %s216, %s219
      %p228 = scmp.eq.s32.totalorder %s29, 1
      %p229 = por %p227, %p228
      %p230 = scmp.ne.s32.totalorder %s219, %s220
      %p231 = scmp.eq.s32.totalorder %s29, 0
      %p232 = por %p230, %p231
      %p233 = scmp.ne.s32.totalorder %s219, %s220
      %p234 = scmp.eq.s32.totalorder %s30, 1
      %p235 = por %p233, %p234
      %p237 = scmp.ne.s32.totalorder %s220, %s236
      %p238 = scmp.eq.s32.totalorder %s30, 0
      %p239 = por %p237, %p238
      %p240 = scmp.le.s32.totalorder 1, %s24
      %p241 = scmp.lt.s32.totalorder %s24, 3
      %p242 = pnand %p240, %p241
      %p243 = pneg %p242
      // Predicated region
      $region9: #{tpu_custom_call.1} parent=5 // pred_check
        _
      $region10: #{tpu_custom_call.1} parent=5 // pred_check_branch
        %245 = sbr.rel (%p242) target = $region12
      $region11: #{tpu_custom_call.1} parent=5 // pred_region
        %s246 = ssub.s32 %s24, 1
        // Predicated region
        $region13: #{tpu_custom_call.1} parent=11 // pred_check
          %p247 = pneg %p85
        $region14: #{tpu_custom_call.1} parent=11 // pred_check_branch
          %249 = sbr.rel (%p247) target = $region16
        $region15: #{tpu_custom_call.1} parent=11 // pred_region
          _
        $region16: #{tpu_custom_call.1} parent=11 // pred_fallthru
          _
        // Predicated region
        $region17: #{tpu_custom_call.1} parent=11 // pred_check
          %p250 = pneg %p106
        $region18: #{tpu_custom_call.1} parent=11 // pred_check_branch
          %252 = sbr.rel (%p250) target = $region20
        $region19: #{tpu_custom_call.1} parent=11 // pred_region
          _
        $region20: #{tpu_custom_call.1} parent=11 // pred_fallthru
          _
        // Predicated region
        $region21: #{tpu_custom_call.1} parent=11 // pred_check
          %p253 = pneg %p127
        $region22: #{tpu_custom_call.1} parent=11 // pred_check_branch
          %255 = sbr.rel (%p253) target = $region24
        $region23: #{tpu_custom_call.1} parent=11 // pred_region
          %s257 = ssub.s32 256, 256
          %258 = vsyncadd [#allocation6], %s257
          %s259 = sshll.u32 [#allocation5], 4
          %s260 = int_to_ptr.vmem [resolvable:$true] %s259
          %265 = dma.hbm_to_vmem [thread:$0]  %s3, 256, %s260, [#allocation6], 64, 64, 4
        $region24: #{tpu_custom_call.1} parent=11 // pred_fallthru
          _
        // Predicated region
        $region25: #{tpu_custom_call.1} parent=11 // pred_check
          %p266 = pneg %p148
        $region26: #{tpu_custom_call.1} parent=11 // pred_check_branch
          %268 = sbr.rel (%p266) target = $region28
        $region27: #{tpu_custom_call.1} parent=11 // pred_region
          _
        $region28: #{tpu_custom_call.1} parent=11 // pred_fallthru
          _
      $region12: #{tpu_custom_call.1} parent=5 // pred_fallthru
        _
      %p269 = scmp.lt.s32.totalorder %s24, 2
      // Predicated region
      $region29: #{tpu_custom_call.1} parent=5 // pred_check
        %p270 = pneg %p269
      $region30: #{tpu_custom_call.1} parent=5 // pred_check_branch
        %272 = sbr.rel (%p270) target = $region32
      $region31: #{tpu_custom_call.1} parent=5 // pred_region
        // Predicated region
        $region33: #{tpu_custom_call.1} parent=31 // pred_check
          %p273 = pneg %p58
        $region34: #{tpu_custom_call.1} parent=31 // pred_check_branch
          %275 = sbr.rel (%p273) target = $region36
        $region35: #{tpu_custom_call.1} parent=31 // pred_region
          %s276 = sand.u32 %s48, 1
          %s277 = scalar_lea.sflag [#allocation3], %s276
          %s278 = sand.u32 %s48, 1
          %s279 = smul.addr %s278, 8
          %s280 = scalar_lea.vmem [#allocation2], %s279
          %s282 = ssub.s32 128, 128
          %283 = vsyncadd %s277, %s282
          %s284 = sadd.s32 %s32, %s31
          %s285 = smul.addr %s284, 128
          %s286 = scalar_lea.hbm %s0, %s285
          %s288 = sshll.u32 %s280, 4
          %s289 = int_to_ptr.vmem [resolvable:$true] %s288
          %291 = dma.hbm_to_vmem [thread:$0]  %s286, 128, %s289, %s277
        $region36: #{tpu_custom_call.1} parent=31 // pred_fallthru
          _
      $region32: #{tpu_custom_call.1} parent=5 // pred_fallthru
        _
      %p292 = scmp.le.s32.totalorder 1, %s24
      %p293 = scmp.lt.s32.totalorder %s24, 3
      %p294 = pnand %p292, %p293
      %p295 = pneg %p294
      // Predicated region
      $region37: #{tpu_custom_call.1} parent=5 // pred_check
        _
      $region38: #{tpu_custom_call.1} parent=5 // pred_check_branch
        %297 = sbr.rel (%p294) target = $region40
      $region39: #{tpu_custom_call.1} parent=5 // pred_region
        %s298 = ssub.s32 %s24, 1
        %s299 = sand.u32 %s51, 1
        %s300 = scalar_lea.sflag [#allocation3], %s299
        %s301 = sand.u32 %s51, 1
        %s302 = smul.addr %s301, 8
        %s303 = scalar_lea.vmem [#allocation2], %s302
        // Predicated region
        $region41: #{tpu_custom_call.1} parent=39 // pred_check
          %p304 = pneg %p64
        $region42: #{tpu_custom_call.1} parent=39 // pred_check_branch
          %306 = sbr.rel (%p304) target = $region44
        $region43: #{tpu_custom_call.1} parent=39 // pred_region
          %307 = dma.done %s300, 128
        $region44: #{tpu_custom_call.1} parent=39 // pred_fallthru
          _
        // Predicated region
        $region45: #{tpu_custom_call.1} parent=39 // pred_check
          %p308 = pneg %p127
        $region46: #{tpu_custom_call.1} parent=39 // pred_check_branch
          %310 = sbr.rel (%p308) target = $region48
        $region47: #{tpu_custom_call.1} parent=39 // pred_region
          %311 = dma.done [#allocation6], 256
        $region48: #{tpu_custom_call.1} parent=39 // pred_fallthru
          _
        %s312 = sand.u32 %s51, 1
        %s313 = scalar_lea.sflag [#allocation3], %s312
        %s314 = sand.u32 %s51, 1
        %s315 = smul.addr %s314, 8
        %s316 = scalar_lea.vmem [#allocation2], %s315
        %p317 = pneg %p64
        %p318 = pneg %p61
        %p319 = pneg %p85
        %p320 = pneg %p82
        %p321 = pneg %p106
        %p322 = pneg %p103
        %p323 = pneg %p127
        %p324 = pneg %p124
        %p325 = pneg %p148
        %p326 = pneg %p145
        %p327 = pneg %p176
        %p328 = pneg %p173
        %s329 = sand.u32 %s163, 1
        %s330 = scalar_lea.sflag [#allocation4], %s329
        %s331 = sand.u32 %s163, 1
        %s332 = smul.addr %s331, 4
        %s333 = scalar_lea.vmem [#allocation7], %s332
        %p334 = pneg %p204
        %p335 = pneg %p201
        %s336 = sand.u32 %s29, 1
        %s337 = scalar_lea.sflag [#allocation9], %s336
        %s338 = sand.u32 %s191, 1
        %s339 = smul.addr %s338, 4
        %s340 = scalar_lea.vmem [#allocation8], %s339
        %p341 = pneg %p232
        %p342 = pneg %p229
        %s343 = sand.u32 %s29, 1
        %s344 = scalar_lea.sflag [#allocation9], %s343
        %s345 = sand.u32 %s219, 1
        %s346 = smul.addr %s345, 4
        %s347 = scalar_lea.vmem [#allocation10], %s346
        %v349 = vld [vmem:[%s303] sm:$0xff]
        %v350 = vld [vmem:[%s1] sm:$0x1]
        %v351 = vld [vmem:[%s2] sm:$0x1]
        %vm352 = vcmask 261120
        %v353 = vsel %vm352, %v349, 0.0
        %354 = vadd.xlane.f32.xlu0 %v353
        %v355 = vpop.xlane.xlu0 %354
        %v356 = vrcp.pop 32.0
        %v357 = vmul.f32 %v355, %v356
        %v358 = vsub.f32 %v349, %v357
        %v359 = vmul.f32 %v358, %v358
        %v360 = vsel %vm352, %v359, 0.0
        %361 = vadd.xlane.f32.xlu0 %v360
        %v362 = vpop.xlane.xlu0 %361
        %v363 = vmul.f32 %v362, %v356
        %v364 = vadd.f32 %v363, 1e-05
        %v365 = vrsqrt.pop %v364
        %v366 = vmul.f32 %v358, %v365
        %v368 = vlaneseq
        %v369 = vshrl.u32 %v368, 7
        %v370 = vsub.s32 0, %v369
        %v371 = vrot.slane %v350, %v370
        %v373 = vmul.f32 %v366, %v371
        %v375 = vlaneseq
        %v376 = vshrl.u32 %v375, 7
        %v377 = vsub.s32 0, %v376
        %v378 = vrot.slane %v351, %v377
        %v380 = vadd.f32 %v373, %v378
        %v381 = vpack.c.bf16 %v380, %v380
        %v382 = vld [vmem:[#allocation5] sm:$0xf]
        %v383 = vld [vmem:[#allocation5 + $0x4] sm:$0xf]
        %v384 = vld [vmem:[#allocation5 + $0x8] sm:$0xf]
        %v385 = vld [vmem:[#allocation5 + $0xc] sm:$0xf]
        %v386 = vld [vmem:[%s4] sm:$0x1]
        %v388 = vlaneseq
        %v389 = vshrl.u32 %v388, 7
        %v390 = vsub.s32 0, %v389
        %v391 = vrot.slane %v386, %v390
        %v397 = vunpack.c.l.b16 %v382
        %v398 = vunpack.c.l.b16 %v383
        %v399 = vunpack.c.l.b16 %v384
        %v400 = vunpack.c.l.b16 %v385
        %v401 = vpack.c.b16 %v398, %v397
        %v402 = vpack.c.b16 %v400, %v399
        %v406 = vsel %vm352, %v381, 0
        %408 = vmatprep.subr.bf16.mxu0 0
        %409 = vmatpush1.bf16.msra.mxu0 %v401
        %410 = vmatprep.subr.bf16.mxu0 0
        %411 = vmatpush1.bf16.msra.mxu0 %v402
        %412 = vmatprep.subr.bf16.mxu0 0
        %413 = vmatpush1.bf16.msra.mxu0 0
        %414 = vmatprep.subr.bf16.mxu0 0
        %415 = vmatpush1.bf16.msra.mxu0 0
        %416 = vmatprep.subr.bf16.mxu0 0
        %417 = vmatpush1.bf16.msra.mxu0 0
        %418 = vmatprep.subr.bf16.mxu0 0
        %419 = vmatpush1.bf16.msra.mxu0 0
        %420 = vmatprep.subr.bf16.mxu0 0
        %421 = vmatpush1.bf16.msra.mxu0 0
        %422 = vmatprep.subr.bf16.mxu0 0
        %423 = vmatpush1.bf16.msra.mxu0 0
        %424 = vmatprep.subr.bf16.mxu0 0
        %425 = vmatpush1.bf16.msra.mxu0 0
        %426 = vmatprep.subr.bf16.mxu0 0
        %427 = vmatpush1.bf16.msra.mxu0 0
        %428 = vmatprep.subr.bf16.mxu0 0
        %429 = vmatpush1.bf16.msra.mxu0 0
        %430 = vmatprep.subr.bf16.mxu0 0
        %431 = vmatpush1.bf16.msra.mxu0 0
        %432 = vmatprep.subr.bf16.mxu0 0
        %433 = vmatpush1.bf16.msra.mxu0 0
        %434 = vmatprep.subr.bf16.mxu0 0
        %435 = vmatpush1.bf16.msra.mxu0 0
        %436 = vmatprep.subr.bf16.mxu0 0
        %437 = vmatpush1.bf16.msra.mxu0 0
        %438 = vmatprep.subr.bf16.mxu0 0
        %439 = vmatpush1.bf16.msra.mxu0 0
        %440 = vmatprep.mubr.bf16.mxu0 0
        %441 = vmatmul.mubr.bf16.gmra.mrb[0].mxu0 %v406
        %v442 = vpop.f32.mrb[0].mxu0
        %v443 = vadd.f32 %v391, %v442
        %v444 = vpop.f32.mrb[0].mxu0
        %v445 = vpop.f32.mrb[0].mxu0
        %v446 = vpop.f32.mrb[0].mxu0
        %447 = vdwg.mxu0
        %vm448 = vweird.f32 %v443
        %vm449 = vmxor %vm448, 1
        %v450 = vsel %vm449, %v443, 0.0
        %v451 = vmul.f32 %v450, 0.35355338
        %v452 = vpack.c.bf16 %v451, %v451
        %vm453 = vcmask 257024
        %454 = vst.msk [vmem:[%s333] sm:$0xf] %vm453, %v452
        %v455 = vpack.c.bf16 %v450, %v450
        %v457 = vunpack.c.l.b16 %v455
        %v458 = vpack.c.b16 %v457, %v457
        %459 = vrot.lane.b32.xlu0 %v458, 96
        %v460 = vpop.permute.xlu0 %459
        %462 = vst.msk [vmem:[%s340] sm:$0xf] %vm453, %v460
        %463 = vrot.lane.b32.xlu0 %v458, 64
        %v464 = vpop.permute.xlu0 %463
        %466 = vst.msk [vmem:[%s347] sm:$0xf] %vm453, %v464
        %s467 = sand.u32 %s163, 1
        %s468 = scalar_lea.sflag [#allocation4], %s467
        %s469 = sand.u32 %s163, 1
        %s470 = smul.addr %s469, 4
        %s471 = scalar_lea.vmem [#allocation7], %s470
        %s472 = sand.u32 %s29, 1
        %s473 = scalar_lea.sflag [#allocation9], %s472
        %s474 = sand.u32 %s191, 1
        %s475 = smul.addr %s474, 4
        %s476 = scalar_lea.vmem [#allocation8], %s475
        %s477 = sand.u32 %s29, 1
        %s478 = scalar_lea.sflag [#allocation9], %s477
        %s479 = sand.u32 %s219, 1
        %s480 = smul.addr %s479, 4
        %s481 = scalar_lea.vmem [#allocation10], %s480
        // Predicated region
        $region49: #{tpu_custom_call.1} parent=39 // pred_check
          %p482 = pneg %p173
        $region50: #{tpu_custom_call.1} parent=39 // pred_check_branch
          %484 = sbr.rel (%p482) target = $region52
        $region51: #{tpu_custom_call.1} parent=39 // pred_region
          %s486 = ssub.s32 64, 64
          %487 = vsyncadd %s468, %s486
          %s488 = sadd.s32 %s34, %s33
          %s489 = smul.addr %s488, 64
          %s490 = scalar_lea.hbm %s5, %s489
          %s492 = sshll.u32 %s471, 4
          %s493 = int_to_ptr.vmem [resolvable:$true] %s492
          %495 = dma.vmem_to_hbm [thread:$0]  %s493, 64, %s490, %s468
        $region52: #{tpu_custom_call.1} parent=39 // pred_fallthru
          _
        // Predicated region
        $region53: #{tpu_custom_call.1} parent=39 // pred_check
          %p496 = pneg %p201
        $region54: #{tpu_custom_call.1} parent=39 // pred_check_branch
          %498 = sbr.rel (%p496) target = $region56
        $region55: #{tpu_custom_call.1} parent=39 // pred_region
          %s500 = ssub.s32 64, 64
          %501 = vsyncadd %s473, %s500
          %s502 = sadd.s32 %s34, %s33
          %s503 = smul.addr %s502, 64
          %s504 = scalar_lea.hbm %s6, %s503
          %s506 = sshll.u32 %s476, 4
          %s507 = int_to_ptr.vmem [resolvable:$true] %s506
          %509 = dma.vmem_to_hbm [thread:$0]  %s507, 64, %s504, %s473
        $region56: #{tpu_custom_call.1} parent=39 // pred_fallthru
          _
        // Predicated region
        $region57: #{tpu_custom_call.1} parent=39 // pred_check
          %p510 = pneg %p229
        $region58: #{tpu_custom_call.1} parent=39 // pred_check_branch
          %512 = sbr.rel (%p510) target = $region60
        $region59: #{tpu_custom_call.1} parent=39 // pred_region
          %s514 = ssub.s32 64, 64
          %515 = vsyncadd %s478, %s514
          %s516 = sadd.s32 %s34, %s33
          %s517 = smul.addr %s516, 64
          %s518 = scalar_lea.hbm %s7, %s517
          %s520 = sshll.u32 %s481, 4
          %s521 = int_to_ptr.vmem [resolvable:$true] %s520
          %523 = dma.vmem_to_hbm [thread:$0]  %s521, 64, %s518, %s478
        $region60: #{tpu_custom_call.1} parent=39 // pred_fallthru
          _
      $region40: #{tpu_custom_call.1} parent=5 // pred_fallthru
        _
      %p524 = scmp.le.s32.totalorder 2, %s24
      // Predicated region
      $region61: #{tpu_custom_call.1} parent=5 // pred_check
        %p525 = pneg %p524
      $region62: #{tpu_custom_call.1} parent=5 // pred_check_branch
        %527 = sbr.rel (%p525) target = $region64
      $region63: #{tpu_custom_call.1} parent=5 // pred_region
        %s528 = ssub.s32 %s24, 2
        // Predicated region
        $region65: #{tpu_custom_call.1} parent=63 // pred_check
          %p529 = pneg %p179
        $region66: #{tpu_custom_call.1} parent=63 // pred_check_branch
          %531 = sbr.rel (%p529) target = $region68
        $region67: #{tpu_custom_call.1} parent=63 // pred_region
          %s532 = sand.u32 %s164, 1
          %s533 = scalar_lea.sflag [#allocation4], %s532
          %s534 = sand.u32 %s164, 1
          %s535 = smul.addr %s534, 4
          %s536 = scalar_lea.vmem [#allocation7], %s535
          %537 = dma.done %s533, 64
        $region68: #{tpu_custom_call.1} parent=63 // pred_fallthru
          _
        // Predicated region
        $region69: #{tpu_custom_call.1} parent=63 // pred_check
          %p538 = pneg %p207
        $region70: #{tpu_custom_call.1} parent=63 // pred_check_branch
          %540 = sbr.rel (%p538) target = $region72
        $region71: #{tpu_custom_call.1} parent=63 // pred_region
          %s541 = sand.u32 %s30, 1
          %s542 = scalar_lea.sflag [#allocation9], %s541
          %s543 = sand.u32 %s192, 1
          %s544 = smul.addr %s543, 4
          %s545 = scalar_lea.vmem [#allocation8], %s544
          %546 = dma.done %s542, 64
        $region72: #{tpu_custom_call.1} parent=63 // pred_fallthru
          _
        // Predicated region
        $region73: #{tpu_custom_call.1} parent=63 // pred_check
          %p547 = pneg %p235
        $region74: #{tpu_custom_call.1} parent=63 // pred_check_branch
          %549 = sbr.rel (%p547) target = $region76
        $region75: #{tpu_custom_call.1} parent=63 // pred_region
          %s550 = sand.u32 %s30, 1
          %s551 = scalar_lea.sflag [#allocation9], %s550
          %s552 = sand.u32 %s220, 1
          %s553 = smul.addr %s552, 4
          %s554 = scalar_lea.vmem [#allocation10], %s553
          %555 = dma.done %s551, 64
        $region76: #{tpu_custom_call.1} parent=63 // pred_fallthru
          _
      $region64: #{tpu_custom_call.1} parent=5 // pred_fallthru
        _
    $region6: #{tpu_custom_call.1} parent=1 // loop_footer
      %s28 = sadd.s32 1, %s24
    $region7: #{tpu_custom_call.1} parent=1 // loop_footer_branch
      %23 = sbr.rel target = $region3
    $region8: #{tpu_custom_call.1} parent=1 // loop_exit
      _
    %556 = vsyncpa [#allocation3], 1
    %s557 = scalar_lea.sflag [#allocation3], 1
    %558 = vsyncpa %s557, 1
    %559 = vsyncpa [#allocation6], 1
    %560 = vsyncpa [#allocation4], 1
    %s561 = scalar_lea.sflag [#allocation4], 1
    %562 = vsyncpa %s561, 1
    %563 = vsyncpa [#allocation9], 1
    %s564 = scalar_lea.sflag [#allocation9], 1
    %565 = vsyncpa %s564, 1

</llo_original>
